<compile_context>
chip_gen: v7x
topology: tpu7x:2x2x1
jax: 0.10.0
libtpu: 0.0.40
codegen_flags: <defaults>
</compile_context>

<pallas_src>
import jax
import jax.numpy as jnp
from jax.experimental import pallas as pl
from jax.experimental.pallas import tpu as pltpu

LANE = 128      # TPU vreg lane width
SUBLANE = 8     # f32 sublane height
MAX_TB = 2048   # max batch-tile rows (multiple of 128; ~0.4 MiB real HBM traffic/step)


def _round_up(x: int, m: int) -> int:
    return ((x + m - 1) // m) * m


def _choose_batch_tile(B: int) -> int:
    if B <= 2 * LANE:
        # Tiny batch: a single (possibly partial) tile, rounded to the f32 sublane.
        return _round_up(B, SUBLANE)
    # Large batch: big tiles to amortize per-step overhead, but capped near B/2 so
    # the parallel batch axis has >= 2 grid steps (v7x megacore sharding).
    return min(MAX_TB, _round_up(pl.cdiv(B, 2), LANE))


def _shape_head_kernel(x_ref, w1_ref, b1_ref, w2r_ref, b2r_ref, w2i_ref, b2i_ref,
                       real_ref, imag_ref):
    # Linear(D -> D//2) + bias + ReLU
    h = jnp.dot(x_ref[...], w1_ref[...], preferred_element_type=jnp.float32)
    h = jnp.maximum(h + b1_ref[...], 0.0)
    # (Dropout is identity in eval mode.)
    # Linear(D//2 -> K) for the real and imaginary halves, written compactly.
    real = jnp.dot(h, w2r_ref[...], preferred_element_type=jnp.float32) + b2r_ref[...]
    imag = jnp.dot(h, w2i_ref[...], preferred_element_type=jnp.float32) + b2i_ref[...]
    real_ref[...] = real.astype(real_ref.dtype)
    imag_ref[...] = imag.astype(imag_ref.dtype)


def shape_modeling_head(x, w1, b1, w2, b2, num_harmonics):
    """x: (B, D) f32.  w1: (D, D//2), b1: (1, D//2), w2: (D//2, 2K), b2: (1, 2K).

    Returns dict with 'real_coeffs' / 'imag_coeffs', each (B, num_harmonics).
    """
    B, D = x.shape
    H = w1.shape[1]
    K = num_harmonics
    assert w2.shape == (H, 2 * K)

    # Split the output projection into real / imag halves (tiny; folds under jit).
    w2r, w2i = w2[:, :K], w2[:, K:]
    b2r, b2i = b2[:, :K], b2[:, K:]

    TB = _choose_batch_tile(B)
    grid = (pl.cdiv(B, TB),)   # ragged last block is handled by Pallas store masking

    real, imag = pl.pallas_call(
        _shape_head_kernel,
        out_shape=(
            jax.ShapeDtypeStruct((B, K), x.dtype),
            jax.ShapeDtypeStruct((B, K), x.dtype),
        ),
        grid_spec=pltpu.PrefetchScalarGridSpec(
            num_scalar_prefetch=0,
            grid=grid,
            in_specs=[
                pl.BlockSpec((TB, D), lambda i: (i, 0)),   # x streams over the batch
                pl.BlockSpec((D, H), lambda i: (0, 0)),    # weights/biases stay resident
                pl.BlockSpec((1, H), lambda i: (0, 0)),
                pl.BlockSpec((H, K), lambda i: (0, 0)),
                pl.BlockSpec((1, K), lambda i: (0, 0)),
                pl.BlockSpec((H, K), lambda i: (0, 0)),
                pl.BlockSpec((1, K), lambda i: (0, 0)),
            ],
            out_specs=[
                pl.BlockSpec((TB, K), lambda i: (i, 0)),
                pl.BlockSpec((TB, K), lambda i: (i, 0)),
            ],
        ),
        compiler_params=pltpu.CompilerParams(
            dimension_semantics=("parallel",),   # batch axis shards across TCs (v7x)
        ),
    )(x, w1, b1, w2r, b2r, w2i, b2i)

    return {"real_coeffs": real, "imag_coeffs": imag}


def init_params(key, input_dim, num_harmonics):
    """Deterministic synthetic parameters matching the PyTorch module's shapes.

    Weights stored as (in_features, out_features) so the kernel computes x @ W directly.
    """
    hidden = input_dim // 2
    out_dim = num_harmonics * 2
    k1, k2, k3, k4 = jax.random.split(key, 4)
    w1 = jax.random.normal(k1, (input_dim, hidden), jnp.float32) * 0.05
    b1 = jax.random.normal(k2, (1, hidden), jnp.float32) * 0.01
    w2 = jax.random.normal(k3, (hidden, out_dim), jnp.float32) * 0.05
    b2 = jax.random.normal(k4, (1, out_dim), jnp.float32) * 0.01
    return w1, b1, w2, b2


if __name__ == "__main__":
    batch = 2
    input_dim = 32
    num_harmonics = 10

    key = jax.random.PRNGKey(0)
    kx, kp = jax.random.split(key)
    x = jax.random.normal(kx, (batch, input_dim), jnp.float32)
    w1, b1, w2, b2 = init_params(kp, input_dim, num_harmonics)

    # Jit the whole wrapper so the weight split / dispatch overheads fuse or fold.
    head = jax.jit(shape_modeling_head, static_argnames=("num_harmonics",))

    out = head(x, w1, b1, w2, b2, num_harmonics=num_harmonics)
    jax.block_until_ready(out)

    # Sanity check against a pure-JAX reference of the same forward pass (eval mode).
    h_ref = jnp.maximum(x @ w1 + b1, 0.0)
    coeffs_ref = h_ref @ w2 + b2
    ref_real = coeffs_ref[:, :num_harmonics]
    ref_imag = coeffs_ref[:, num_harmonics:]

    assert out["real_coeffs"].shape == (batch, num_harmonics)
    assert out["imag_coeffs"].shape == (batch, num_harmonics)
    assert jnp.allclose(out["real_coeffs"], ref_real, atol=1e-5)
    assert jnp.allclose(out["imag_coeffs"], ref_imag, atol=1e-5)

    # Second check at a larger batch that exercises a multi-step, ragged grid
    # (TB = 640 -> grid of 2 steps, last block partially out of range).
    big_B = 1030
    xb = jax.random.normal(jax.random.PRNGKey(7), (big_B, input_dim), jnp.float32)
    out_b = head(xb, w1, b1, w2, b2, num_harmonics=num_harmonics)
    jax.block_until_ready(out_b)
    hb = jnp.maximum(xb @ w1 + b1, 0.0)
    cb = hb @ w2 + b2
    assert jnp.allclose(out_b["real_coeffs"], cb[:, :num_harmonics], atol=1e-4)
    assert jnp.allclose(out_b["imag_coeffs"], cb[:, num_harmonics:], atol=1e-4)

    print("KERNEL_OK")
</pallas_src>

<mosaic_0001>
module attributes {stable_mosaic.version = 11 : i64} {
  func.func @_shape_head_kernel(%arg0: i32, %arg1: memref<8x32xf32, #tpu.memory_space<vmem>>, %arg2: memref<32x16xf32, #tpu.memory_space<vmem>>, %arg3: memref<1x16xf32, #tpu.memory_space<vmem>>, %arg4: memref<16x10xf32, #tpu.memory_space<vmem>>, %arg5: memref<1x10xf32, #tpu.memory_space<vmem>>, %arg6: memref<16x10xf32, #tpu.memory_space<vmem>>, %arg7: memref<1x10xf32, #tpu.memory_space<vmem>>, %arg8: memref<8x10xf32, #tpu.memory_space<vmem>>, %arg9: memref<8x10xf32, #tpu.memory_space<vmem>>) attributes {dimension_semantics = [#tpu.dimension_semantics<parallel>], iteration_bounds = array<i64: 1>, scalar_prefetch = 0 : i64, scratch_operands = 0 : i64, tpu.core_type = #tpu.core_type<tc>, window_params = [{transform_indices = @transform_0, window_bounds = array<i64: 8, 32>}, {pipeline_mode = #tpu.pipeline_mode<synchronous>, transform_indices = @transform_1, window_bounds = array<i64: 32, 16>}, {pipeline_mode = #tpu.pipeline_mode<synchronous>, transform_indices = @transform_2, window_bounds = array<i64: 1, 16>}, {pipeline_mode = #tpu.pipeline_mode<synchronous>, transform_indices = @transform_3, window_bounds = array<i64: 16, 10>}, {pipeline_mode = #tpu.pipeline_mode<synchronous>, transform_indices = @transform_4, window_bounds = array<i64: 1, 10>}, {pipeline_mode = #tpu.pipeline_mode<synchronous>, transform_indices = @transform_5, window_bounds = array<i64: 16, 10>}, {pipeline_mode = #tpu.pipeline_mode<synchronous>, transform_indices = @transform_6, window_bounds = array<i64: 1, 10>}, {transform_indices = @transform_7, window_bounds = array<i64: 8, 10>}, {transform_indices = @transform_8, window_bounds = array<i64: 8, 10>}]} {
    %c0 = arith.constant 0 : index
    %c0_0 = arith.constant 0 : index
    %0 = vector.load %arg1[%c0, %c0_0] : memref<8x32xf32, #tpu.memory_space<vmem>>, vector<8x32xf32>
    %c0_1 = arith.constant 0 : index
    %c0_2 = arith.constant 0 : index
    %1 = vector.load %arg2[%c0_1, %c0_2] : memref<32x16xf32, #tpu.memory_space<vmem>>, vector<32x16xf32>
    %cst = arith.constant dense<0.000000e+00> : vector<8x16xf32>
    %2 = tpu.matmul %0, %1, %cst {dimension_numbers = #tpu.dot_dimension_numbers<[1], [0], [0], [1], [0, 0, 1, 1], [], []>} : vector<8x32xf32>, vector<32x16xf32>, vector<8x16xf32> -> vector<8x16xf32>
    %c0_3 = arith.constant 0 : index
    %c0_4 = arith.constant 0 : index
    %3 = vector.load %arg3[%c0_3, %c0_4] : memref<1x16xf32, #tpu.memory_space<vmem>>, vector<1x16xf32>
    %4 = vector.broadcast %3 : vector<1x16xf32> to vector<8x16xf32>
    %5 = arith.addf %2, %4 : vector<8x16xf32>
    %cst_5 = arith.constant 0.000000e+00 : f32
    %6 = vector.broadcast %cst_5 : f32 to vector<8x16xf32>
    %7 = arith.maximumf %5, %6 : vector<8x16xf32>
    %c0_6 = arith.constant 0 : index
    %c0_7 = arith.constant 0 : index
    %8 = vector.load %arg4[%c0_6, %c0_7] : memref<16x10xf32, #tpu.memory_space<vmem>>, vector<16x10xf32>
    %cst_8 = arith.constant dense<0.000000e+00> : vector<8x10xf32>
    %9 = tpu.matmul %7, %8, %cst_8 {dimension_numbers = #tpu.dot_dimension_numbers<[1], [0], [0], [1], [0, 0, 1, 1], [], []>} : vector<8x16xf32>, vector<16x10xf32>, vector<8x10xf32> -> vector<8x10xf32>
    %c0_9 = arith.constant 0 : index
    %c0_10 = arith.constant 0 : index
    %10 = vector.load %arg5[%c0_9, %c0_10] : memref<1x10xf32, #tpu.memory_space<vmem>>, vector<1x10xf32>
    %11 = vector.broadcast %10 : vector<1x10xf32> to vector<8x10xf32>
    %12 = arith.addf %9, %11 : vector<8x10xf32>
    %c0_11 = arith.constant 0 : index
    %c0_12 = arith.constant 0 : index
    %13 = vector.load %arg6[%c0_11, %c0_12] : memref<16x10xf32, #tpu.memory_space<vmem>>, vector<16x10xf32>
    %cst_13 = arith.constant dense<0.000000e+00> : vector<8x10xf32>
    %14 = tpu.matmul %7, %13, %cst_13 {dimension_numbers = #tpu.dot_dimension_numbers<[1], [0], [0], [1], [0, 0, 1, 1], [], []>} : vector<8x16xf32>, vector<16x10xf32>, vector<8x10xf32> -> vector<8x10xf32>
    %c0_14 = arith.constant 0 : index
    %c0_15 = arith.constant 0 : index
    %15 = vector.load %arg7[%c0_14, %c0_15] : memref<1x10xf32, #tpu.memory_space<vmem>>, vector<1x10xf32>
    %16 = vector.broadcast %15 : vector<1x10xf32> to vector<8x10xf32>
    %17 = arith.addf %14, %16 : vector<8x10xf32>
    %c0_16 = arith.constant 0 : index
    %c0_17 = arith.constant 0 : index
    %18 = vector.load %arg8[%c0_16, %c0_17] : memref<8x10xf32, #tpu.memory_space<vmem>>, vector<8x10xf32>
    tpu.vector_store %arg8[%c0_16, %c0_17], %12 {strides = array<i32>} : memref<8x10xf32, #tpu.memory_space<vmem>>, vector<8x10xf32>,
    %c0_18 = arith.constant 0 : index
    %c0_19 = arith.constant 0 : index
    %19 = vector.load %arg9[%c0_18, %c0_19] : memref<8x10xf32, #tpu.memory_space<vmem>>, vector<8x10xf32>
    tpu.vector_store %arg9[%c0_18, %c0_19], %17 {strides = array<i32>} : memref<8x10xf32, #tpu.memory_space<vmem>>, vector<8x10xf32>,
    return
  }
  func.func @transform_0(%arg0: i32) -> (i32, i32) {
    %c0_i32 = arith.constant 0 : i32
    %c0_i32_0 = arith.constant 0 : i32
    return %arg0, %c0_i32 : i32, i32
  }
  func.func @transform_1(%arg0: i32) -> (i32, i32) {
    %c0_i32 = arith.constant 0 : i32
    %c0_i32_0 = arith.constant 0 : i32
    %c0_i32_1 = arith.constant 0 : i32
    return %c0_i32, %c0_i32_0 : i32, i32
  }
  func.func @transform_2(%arg0: i32) -> (i32, i32) {
    %c0_i32 = arith.constant 0 : i32
    %c0_i32_0 = arith.constant 0 : i32
    %c0_i32_1 = arith.constant 0 : i32
    return %c0_i32, %c0_i32_0 : i32, i32
  }
  func.func @transform_3(%arg0: i32) -> (i32, i32) {
    %c0_i32 = arith.constant 0 : i32
    %c0_i32_0 = arith.constant 0 : i32
    %c0_i32_1 = arith.constant 0 : i32
    return %c0_i32, %c0_i32_0 : i32, i32
  }
  func.func @transform_4(%arg0: i32) -> (i32, i32) {
    %c0_i32 = arith.constant 0 : i32
    %c0_i32_0 = arith.constant 0 : i32
    %c0_i32_1 = arith.constant 0 : i32
    return %c0_i32, %c0_i32_0 : i32, i32
  }
  func.func @transform_5(%arg0: i32) -> (i32, i32) {
    %c0_i32 = arith.constant 0 : i32
    %c0_i32_0 = arith.constant 0 : i32
    %c0_i32_1 = arith.constant 0 : i32
    return %c0_i32, %c0_i32_0 : i32, i32
  }
  func.func @transform_6(%arg0: i32) -> (i32, i32) {
    %c0_i32 = arith.constant 0 : i32
    %c0_i32_0 = arith.constant 0 : i32
    %c0_i32_1 = arith.constant 0 : i32
    return %c0_i32, %c0_i32_0 : i32, i32
  }
  func.func @transform_7(%arg0: i32) -> (i32, i32) {
    %c0_i32 = arith.constant 0 : i32
    %c0_i32_0 = arith.constant 0 : i32
    return %arg0, %c0_i32 : i32, i32
  }
  func.func @transform_8(%arg0: i32) -> (i32, i32) {
    %c0_i32 = arith.constant 0 : i32
    %c0_i32_0 = arith.constant 0 : i32
    return %arg0, %c0_i32 : i32, i32
  }
}

</mosaic_0001>

<llo_original>
// kernel: shape_modeling_head.1
$region0: #{shape_modeling_head.1}
  #allocation0 [shape = 'u32[]', space=smem, size = 0x4, offset = 0x4, fixed_abs, tag = 'smem constant byte address 0x4 - core index']
  #allocation1 [shape = 'u32[144,128]{1,0:T(1,128)}', space=vmem, size = 0x12000, scoped, tag = 'internal scratch']
  %s0 = inlined_call_operand.vmem [shape: f32[2,32], index: 0, kind: input, shape index: {}]
  %s1 = inlined_call_operand.vmem [shape: f32[32,16], index: 1, kind: input, shape index: {}]
  %s2 = inlined_call_operand.vmem [shape: f32[1,16], index: 2, kind: input, shape index: {}]
  %s3 = inlined_call_operand.vmem [shape: f32[16,10], index: 3, kind: input, shape index: {}]
  %s4 = inlined_call_operand.vmem [shape: f32[1,10], index: 4, kind: input, shape index: {}]
  %s5 = inlined_call_operand.vmem [shape: f32[16,10], index: 5, kind: input, shape index: {}]
  %s6 = inlined_call_operand.vmem [shape: f32[1,10], index: 6, kind: input, shape index: {}]
  %s7 = inlined_call_operand.hbm [shape: f32[2,10], index: 7, kind: output, shape index: {0}]
  %s8 = inlined_call_operand.hbm [shape: f32[2,10], index: 8, kind: output, shape index: {1}]
  %9 = xla_tuple %s7, %s8
  %s10 = sld [smem:[#allocation0]]
  $region46: #{shape_modeling_head.1} parent=0
    _
  %s12 = ssub.s32 1, %s10
  %s13 = scalar_select 0, %s12, %s10
  $region1: #{shape_modeling_head.1} parent=0
    #allocation2 [shape = 'u8[4096]{0}', space=vmem, size = 0x1000, scoped, tag = 'output window, operand 0, single buffered']
    #allocation3 [shape = 's32[1]{0}', space=sflag, size = 0x4, scoped, tag = 'scoped memory for shape_modeling_head.1']
    #allocation4 [shape = 'u8[4096]{0}', space=vmem, size = 0x1000, scoped, tag = 'output window, operand 1, single buffered']
    #allocation5 [shape = 's32[1]{0}', space=sflag, size = 0x4, scoped, tag = 'scoped memory for shape_modeling_head.1']
    %14 = vsyncpa [#allocation3], 0
    %15 = vsyncpa [#allocation5], 0
    // Predicated region
    $region2: #{shape_modeling_head.1} parent=1 // pred_check
      _
    $region3: #{shape_modeling_head.1} parent=1 // pred_check_branch
      %17 = sbr.rel (0) target = $region5
    $region4: #{shape_modeling_head.1} parent=1 // pred_region
      _
    $region5: #{shape_modeling_head.1} parent=1 // pred_fallthru
      _
    // Predicated region
    $region6: #{shape_modeling_head.1} parent=1 // pred_check
      _
    $region7: #{shape_modeling_head.1} parent=1 // pred_check_branch
      %19 = sbr.rel (0) target = $region9
    $region8: #{shape_modeling_head.1} parent=1 // pred_region
      _
    $region9: #{shape_modeling_head.1} parent=1 // pred_fallthru
      _
    // Predicated region
    $region10: #{shape_modeling_head.1} parent=1 // pred_check
      _
    $region11: #{shape_modeling_head.1} parent=1 // pred_check_branch
      %21 = sbr.rel (0) target = $region13
    $region12: #{shape_modeling_head.1} parent=1 // pred_region
      _
    $region13: #{shape_modeling_head.1} parent=1 // pred_fallthru
      _
    // Predicated region
    $region14: #{shape_modeling_head.1} parent=1 // pred_check
      _
    $region15: #{shape_modeling_head.1} parent=1 // pred_check_branch
      %23 = sbr.rel (0) target = $region17
    $region16: #{shape_modeling_head.1} parent=1 // pred_region
      _
    $region17: #{shape_modeling_head.1} parent=1 // pred_fallthru
      _
    // Predicated region
    $region18: #{shape_modeling_head.1} parent=1 // pred_check
      _
    $region19: #{shape_modeling_head.1} parent=1 // pred_check_branch
      %25 = sbr.rel (0) target = $region21
    $region20: #{shape_modeling_head.1} parent=1 // pred_region
      _
    $region21: #{shape_modeling_head.1} parent=1 // pred_fallthru
      _
    // Predicated region
    $region22: #{shape_modeling_head.1} parent=1 // pred_check
      _
    $region23: #{shape_modeling_head.1} parent=1 // pred_check_branch
      %27 = sbr.rel (0) target = $region25
    $region24: #{shape_modeling_head.1} parent=1 // pred_region
      _
    $region25: #{shape_modeling_head.1} parent=1 // pred_fallthru
      _
    // Predicated region
    $region26: #{shape_modeling_head.1} parent=1 // pred_check
      _
    $region27: #{shape_modeling_head.1} parent=1 // pred_check_branch
      %29 = sbr.rel (0) target = $region29
    $region28: #{shape_modeling_head.1} parent=1 // pred_region
      _
    $region29: #{shape_modeling_head.1} parent=1 // pred_fallthru
      _
    %v30 = vld [vmem:[%s0] sm:$0xff]
    %v31 = vld [vmem:[%s1] sm:$0xff]
    %v32 = vld [vmem:[%s1 + $0x8] sm:$0xff]
    %v33 = vld [vmem:[%s1 + $0x10] sm:$0xff]
    %v34 = vld [vmem:[%s1 + $0x18] sm:$0xff]
    %v35 = vld [vmem:[%s2] sm:$0x1]
    %v37 = vlaneseq
    %v38 = vshrl.u32 %v37, 7
    %v39 = vsub.s32 0, %v38
    %v40 = vrot.slane %v35, %v39
    %vm42 = vcmask 261120
    %v44 = vsel %vm42, %v30, 0
    %46 = vmatprep.subr.mxu0 0.0
    %47 = vmatpush1.msra.mxu0 %v31
    %48 = vmatprep.subr.mxu0 0.0
    %49 = vmatpush1.msra.mxu0 %v32
    %50 = vmatprep.subr.mxu0 0.0
    %51 = vmatpush1.msra.mxu0 %v33
    %52 = vmatprep.subr.mxu0 0.0
    %53 = vmatpush1.msra.mxu0 %v34
    %54 = vmatprep.subr.mxu0 0.0
    %55 = vmatpush1.msra.mxu0 0.0
    %56 = vmatprep.subr.mxu0 0.0
    %57 = vmatpush1.msra.mxu0 0.0
    %58 = vmatprep.subr.mxu0 0.0
    %59 = vmatpush1.msra.mxu0 0.0
    %60 = vmatprep.subr.mxu0 0.0
    %61 = vmatpush1.msra.mxu0 0.0
    %62 = vmatprep.subr.mxu0 0.0
    %63 = vmatpush1.msra.mxu0 0.0
    %64 = vmatprep.subr.mxu0 0.0
    %65 = vmatpush1.msra.mxu0 0.0
    %66 = vmatprep.subr.mxu0 0.0
    %67 = vmatpush1.msra.mxu0 0.0
    %68 = vmatprep.subr.mxu0 0.0
    %69 = vmatpush1.msra.mxu0 0.0
    %70 = vmatprep.subr.mxu0 0.0
    %71 = vmatpush1.msra.mxu0 0.0
    %72 = vmatprep.subr.mxu0 0.0
    %73 = vmatpush1.msra.mxu0 0.0
    %74 = vmatprep.subr.mxu0 0.0
    %75 = vmatpush1.msra.mxu0 0.0
    %76 = vmatprep.subr.mxu0 0.0
    %77 = vmatpush1.msra.mxu0 0.0
    %78 = vmatprep.subr.mxu0 0.0
    %79 = vmatpush1.msra.mxu0 0.0
    %80 = vmatprep.subr.mxu0 0.0
    %81 = vmatpush1.msra.mxu0 0.0
    %82 = vmatprep.subr.mxu0 0.0
    %83 = vmatpush1.msra.mxu0 0.0
    %84 = vmatprep.subr.mxu0 0.0
    %85 = vmatpush1.msra.mxu0 0.0
    %86 = vmatprep.subr.mxu0 0.0
    %87 = vmatpush1.msra.mxu0 0.0
    %88 = vmatprep.subr.mxu0 0.0
    %89 = vmatpush1.msra.mxu0 0.0
    %90 = vmatprep.subr.mxu0 0.0
    %91 = vmatpush1.msra.mxu0 0.0
    %92 = vmatprep.subr.mxu0 0.0
    %93 = vmatpush1.msra.mxu0 0.0
    %94 = vmatprep.subr.mxu0 0.0
    %95 = vmatpush1.msra.mxu0 0.0
    %96 = vmatprep.subr.mxu0 0.0
    %97 = vmatpush1.msra.mxu0 0.0
    %98 = vmatprep.subr.mxu0 0.0
    %99 = vmatpush1.msra.mxu0 0.0
    %100 = vmatprep.subr.mxu0 0.0
    %101 = vmatpush1.msra.mxu0 0.0
    %102 = vmatprep.subr.mxu0 0.0
    %103 = vmatpush1.msra.mxu0 0.0
    %104 = vmatprep.subr.mxu0 0.0
    %105 = vmatpush1.msra.mxu0 0.0
    %106 = vmatprep.subr.mxu0 0.0
    %107 = vmatpush1.msra.mxu0 0.0
    %108 = vmatprep.subr.mxu0 0.0
    %109 = vmatpush1.msra.mxu0 0.0
    %110 = vmatprep.mubr.f32.mxu0 0.0
    %111 = vmatmul.mubr.f32.gmra.mrb[0].mxu0 %v44
    %v112 = vpop.f32.mrb[0].mxu0
    %v113 = vadd.f32 %v40, %v112
    %v114 = vpop.f32.mrb[0].mxu0
    %115 = vdwg.mxu0
    %v116 = vmax.f32 %v113, 0.0
    %v117 = vld [vmem:[%s3] sm:$0xff]
    %v118 = vld [vmem:[%s3 + $0x8] sm:$0xff]
    %v119 = vld [vmem:[%s4] sm:$0x1]
    %v121 = vlaneseq
    %v122 = vshrl.u32 %v121, 7
    %v123 = vsub.s32 0, %v122
    %v124 = vrot.slane %v119, %v123
    %vm126 = vcmask 130048
    %v128 = vsel %vm126, %v116, 0
    %130 = vmatprep.subr.mxu0 0.0
    %131 = vmatpush1.msra.mxu0 %v117
    %132 = vmatprep.subr.mxu0 0.0
    %133 = vmatpush1.msra.mxu0 %v118
    %134 = vmatprep.subr.mxu0 0.0
    %135 = vmatpush1.msra.mxu0 0.0
    %136 = vmatprep.subr.mxu0 0.0
    %137 = vmatpush1.msra.mxu0 0.0
    %138 = vmatprep.subr.mxu0 0.0
    %139 = vmatpush1.msra.mxu0 0.0
    %140 = vmatprep.subr.mxu0 0.0
    %141 = vmatpush1.msra.mxu0 0.0
    %142 = vmatprep.subr.mxu0 0.0
    %143 = vmatpush1.msra.mxu0 0.0
    %144 = vmatprep.subr.mxu0 0.0
    %145 = vmatpush1.msra.mxu0 0.0
    %146 = vmatprep.subr.mxu0 0.0
    %147 = vmatpush1.msra.mxu0 0.0
    %148 = vmatprep.subr.mxu0 0.0
    %149 = vmatpush1.msra.mxu0 0.0
    %150 = vmatprep.subr.mxu0 0.0
    %151 = vmatpush1.msra.mxu0 0.0
    %152 = vmatprep.subr.mxu0 0.0
    %153 = vmatpush1.msra.mxu0 0.0
    %154 = vmatprep.subr.mxu0 0.0
    %155 = vmatpush1.msra.mxu0 0.0
    %156 = vmatprep.subr.mxu0 0.0
    %157 = vmatpush1.msra.mxu0 0.0
    %158 = vmatprep.subr.mxu0 0.0
    %159 = vmatpush1.msra.mxu0 0.0
    %160 = vmatprep.subr.mxu0 0.0
    %161 = vmatpush1.msra.mxu0 0.0
    %162 = vmatprep.subr.mxu0 0.0
    %163 = vmatpush1.msra.mxu0 0.0
    %164 = vmatprep.subr.mxu0 0.0
    %165 = vmatpush1.msra.mxu0 0.0
    %166 = vmatprep.subr.mxu0 0.0
    %167 = vmatpush1.msra.mxu0 0.0
    %168 = vmatprep.subr.mxu0 0.0
    %169 = vmatpush1.msra.mxu0 0.0
    %170 = vmatprep.subr.mxu0 0.0
    %171 = vmatpush1.msra.mxu0 0.0
    %172 = vmatprep.subr.mxu0 0.0
    %173 = vmatpush1.msra.mxu0 0.0
    %174 = vmatprep.subr.mxu0 0.0
    %175 = vmatpush1.msra.mxu0 0.0
    %176 = vmatprep.subr.mxu0 0.0
    %177 = vmatpush1.msra.mxu0 0.0
    %178 = vmatprep.subr.mxu0 0.0
    %179 = vmatpush1.msra.mxu0 0.0
    %180 = vmatprep.subr.mxu0 0.0
    %181 = vmatpush1.msra.mxu0 0.0
    %182 = vmatprep.subr.mxu0 0.0
    %183 = vmatpush1.msra.mxu0 0.0
    %184 = vmatprep.subr.mxu0 0.0
    %185 = vmatpush1.msra.mxu0 0.0
    %186 = vmatprep.subr.mxu0 0.0
    %187 = vmatpush1.msra.mxu0 0.0
    %188 = vmatprep.subr.mxu0 0.0
    %189 = vmatpush1.msra.mxu0 0.0
    %190 = vmatprep.subr.mxu0 0.0
    %191 = vmatpush1.msra.mxu0 0.0
    %192 = vmatprep.subr.mxu0 0.0
    %193 = vmatpush1.msra.mxu0 0.0
    %194 = vmatprep.mubr.f32.mxu0 0.0
    %195 = vmatmul.mubr.f32.gmra.mrb[0].mxu0 %v128
    %v196 = vpop.f32.mrb[0].mxu0
    %v197 = vadd.f32 %v124, %v196
    %v198 = vpop.f32.mrb[0].mxu0
    %199 = vdwg.mxu0
    %v200 = vld [vmem:[%s5] sm:$0xff]
    %v201 = vld [vmem:[%s5 + $0x8] sm:$0xff]
    %v202 = vld [vmem:[%s6] sm:$0x1]
    %v204 = vlaneseq
    %v205 = vshrl.u32 %v204, 7
    %v206 = vsub.s32 0, %v205
    %v207 = vrot.slane %v202, %v206
    %209 = vmatprep.subr.mxu0 0.0
    %210 = vmatpush1.msra.mxu0 %v200
    %211 = vmatprep.subr.mxu0 0.0
    %212 = vmatpush1.msra.mxu0 %v201
    %213 = vmatprep.subr.mxu0 0.0
    %214 = vmatpush1.msra.mxu0 0.0
    %215 = vmatprep.subr.mxu0 0.0
    %216 = vmatpush1.msra.mxu0 0.0
    %217 = vmatprep.subr.mxu0 0.0
    %218 = vmatpush1.msra.mxu0 0.0
    %219 = vmatprep.subr.mxu0 0.0
    %220 = vmatpush1.msra.mxu0 0.0
    %221 = vmatprep.subr.mxu0 0.0
    %222 = vmatpush1.msra.mxu0 0.0
    %223 = vmatprep.subr.mxu0 0.0
    %224 = vmatpush1.msra.mxu0 0.0
    %225 = vmatprep.subr.mxu0 0.0
    %226 = vmatpush1.msra.mxu0 0.0
    %227 = vmatprep.subr.mxu0 0.0
    %228 = vmatpush1.msra.mxu0 0.0
    %229 = vmatprep.subr.mxu0 0.0
    %230 = vmatpush1.msra.mxu0 0.0
    %231 = vmatprep.subr.mxu0 0.0
    %232 = vmatpush1.msra.mxu0 0.0
    %233 = vmatprep.subr.mxu0 0.0
    %234 = vmatpush1.msra.mxu0 0.0
    %235 = vmatprep.subr.mxu0 0.0
    %236 = vmatpush1.msra.mxu0 0.0
    %237 = vmatprep.subr.mxu0 0.0
    %238 = vmatpush1.msra.mxu0 0.0
    %239 = vmatprep.subr.mxu0 0.0
    %240 = vmatpush1.msra.mxu0 0.0
    %241 = vmatprep.subr.mxu0 0.0
    %242 = vmatpush1.msra.mxu0 0.0
    %243 = vmatprep.subr.mxu0 0.0
    %244 = vmatpush1.msra.mxu0 0.0
    %245 = vmatprep.subr.mxu0 0.0
    %246 = vmatpush1.msra.mxu0 0.0
    %247 = vmatprep.subr.mxu0 0.0
    %248 = vmatpush1.msra.mxu0 0.0
    %249 = vmatprep.subr.mxu0 0.0
    %250 = vmatpush1.msra.mxu0 0.0
    %251 = vmatprep.subr.mxu0 0.0
    %252 = vmatpush1.msra.mxu0 0.0
    %253 = vmatprep.subr.mxu0 0.0
    %254 = vmatpush1.msra.mxu0 0.0
    %255 = vmatprep.subr.mxu0 0.0
    %256 = vmatpush1.msra.mxu0 0.0
    %257 = vmatprep.subr.mxu0 0.0
    %258 = vmatpush1.msra.mxu0 0.0
    %259 = vmatprep.subr.mxu0 0.0
    %260 = vmatpush1.msra.mxu0 0.0
    %261 = vmatprep.subr.mxu0 0.0
    %262 = vmatpush1.msra.mxu0 0.0
    %263 = vmatprep.subr.mxu0 0.0
    %264 = vmatpush1.msra.mxu0 0.0
    %265 = vmatprep.subr.mxu0 0.0
    %266 = vmatpush1.msra.mxu0 0.0
    %267 = vmatprep.subr.mxu0 0.0
    %268 = vmatpush1.msra.mxu0 0.0
    %269 = vmatprep.subr.mxu0 0.0
    %270 = vmatpush1.msra.mxu0 0.0
    %271 = vmatprep.subr.mxu0 0.0
    %272 = vmatpush1.msra.mxu0 0.0
    %273 = vmatprep.mubr.f32.mxu0 0.0
    %274 = vmatmul.mubr.f32.gmra.mrb[0].mxu0 %v128
    %v275 = vpop.f32.mrb[0].mxu0
    %v276 = vadd.f32 %v207, %v275
    %v277 = vpop.f32.mrb[0].mxu0
    %278 = vdwg.mxu0
    %vm279 = vcmask 80896
    %280 = vst.msk [vmem:[#allocation2] sm:$0xff] %vm279, %v197
    %281 = vst.msk [vmem:[#allocation4] sm:$0xff] %vm279, %v276
    // Predicated region
    $region30: #{shape_modeling_head.1} parent=1 // pred_check
      _
    $region31: #{shape_modeling_head.1} parent=1 // pred_check_branch
      %283 = sbr.rel (0) target = $region33
    $region32: #{shape_modeling_head.1} parent=1 // pred_region
      %s285 = ssub.s32 128, 32
      %286 = vsyncadd [#allocation3], %s285
      %s287 = sshll.u32 [#allocation2], 4
      %s288 = int_to_ptr.vmem [resolvable:$true] %s287
      %293 = dma.vmem_to_hbm [thread:$0]  %s288, 32, %s7, [#allocation3], 32, 32, 2
    $region33: #{shape_modeling_head.1} parent=1 // pred_fallthru
      _
    // Predicated region
    $region34: #{shape_modeling_head.1} parent=1 // pred_check
      _
    $region35: #{shape_modeling_head.1} parent=1 // pred_check_branch
      %295 = sbr.rel (0) target = $region37
    $region36: #{shape_modeling_head.1} parent=1 // pred_region
      %s297 = ssub.s32 128, 32
      %298 = vsyncadd [#allocation5], %s297
      %s299 = sshll.u32 [#allocation4], 4
      %s300 = int_to_ptr.vmem [resolvable:$true] %s299
      %305 = dma.vmem_to_hbm [thread:$0]  %s300, 32, %s8, [#allocation5], 32, 32, 2
    $region37: #{shape_modeling_head.1} parent=1 // pred_fallthru
      _
    // Predicated region
    $region38: #{shape_modeling_head.1} parent=1 // pred_check
      _
    $region39: #{shape_modeling_head.1} parent=1 // pred_check_branch
      %307 = sbr.rel (0) target = $region41
    $region40: #{shape_modeling_head.1} parent=1 // pred_region
      %308 = dma.done [#allocation3], 128
    $region41: #{shape_modeling_head.1} parent=1 // pred_fallthru
      _
    // Predicated region
    $region42: #{shape_modeling_head.1} parent=1 // pred_check
      _
    $region43: #{shape_modeling_head.1} parent=1 // pred_check_branch
      %310 = sbr.rel (0) target = $region45
    $region44: #{shape_modeling_head.1} parent=1 // pred_region
      %311 = dma.done [#allocation5], 128
    $region45: #{shape_modeling_head.1} parent=1 // pred_fallthru
      _
    %312 = vsyncpa [#allocation3], 1
    %313 = vsyncpa [#allocation5], 1

</llo_original>
